<compile_context>
chip_gen: v7x
topology: tpu7x:2x2x1
jax: 0.10.0
libtpu: 0.0.40
codegen_flags: <defaults>
</compile_context>

<pallas_src>
import jax
import jax.numpy as jnp
from jax.experimental import pallas as pl
from jax.experimental.pallas import tpu as pltpu


def conv_stats_kernel(x_ref, w_ref, y_ref, stats_ref, xpad_ref):
    """Pass 1 (one batch per grid step).

    x_ref    : (1, L, C)   bf16 input block
    w_ref    : (3, C, C)   bf16 conv weight, [tap, c_in, c_out]
    y_ref    : (1, Lc, C)  f32 conv output (no bias; BN cancels it)
    stats_ref: (1, 2, C)   f32 per-batch [sum; sum-of-squares] over Lc rows
    xpad_ref : (L+4, C)    bf16 VMEM scratch holding the circularly padded x
    """
    _, L, C = x_ref.shape
    Lc = L + 2

    # Circular pad=2, staged once in VMEM: one dense store + two 2-row wrap stores.
    xb = x_ref[0]                              # (L, C) bf16
    xpad_ref[2:L + 2, :] = xb
    xpad_ref[0:2, :] = xb[L - 2:L, :]
    xpad_ref[L + 2:L + 4, :] = xb[0:2, :]

    # Conv1d(k=3) as three accumulating bf16 MXU dots (f32 accumulation); the
    # shifted tap operands are plain static slices of the padded scratch.
    acc = jnp.dot(xpad_ref[0:Lc, :], w_ref[0], preferred_element_type=jnp.float32)
    for k in (1, 2):
        acc = acc + jnp.dot(xpad_ref[k:k + Lc, :], w_ref[k],
                            preferred_element_type=jnp.float32)
    y_ref[0] = acc                             # (Lc, C) f32

    # BN statistics folded into this pass (per-batch partials, combined outside).
    stats_ref[0, 0:1, :] = jnp.sum(acc, axis=0, keepdims=True)
    stats_ref[0, 1:2, :] = jnp.sum(acc * acc, axis=0, keepdims=True)


def bn_elu_pool_kernel(y_ref, scale_ref, shift_ref, o_ref, zp_ref):
    """Pass 2 (one batch per grid step).

    y_ref    : (1, Lc, C)  f32 conv output block
    scale_ref: (1, C)      f32 folded BN scale  (gamma * inv_std)
    shift_ref: (1, C)      f32 folded BN shift  (beta - mean * scale)
    o_ref    : (1, Lp, C)  f32 pooled output block
    zp_ref   : (Lc+2, C)   f32 VMEM scratch for the pool window
    """
    _, Lc, C = y_ref.shape
    Lp = o_ref.shape[1]

    # BN affine + ELU(alpha=1), elementwise math in f32 (v5e-safe).
    z = y_ref[0] * scale_ref[...] + shift_ref[...]
    z = jnp.where(z > 0, z, jnp.exp(jnp.minimum(z, 0.0)) - 1.0)

    # MaxPool1d(kernel=3, stride=2, padding=1).  Write ONLY the 2 pad rows and
    # the Lc data rows (no blanket fill).  -1e30 is neutral because ELU >= -1.
    neg = jnp.full((1, C), -1e30, jnp.float32)
    zp_ref[0:1, :] = neg
    zp_ref[Lc + 1:Lc + 2, :] = neg
    zp_ref[1:Lc + 1, :] = z

    # 3-tap window max once over the whole scratch via two shifted slice-maxes,
    # then a SINGLE stride-2 read and a SINGLE dense output store.
    w = jnp.maximum(zp_ref[0:Lc, :],
                    jnp.maximum(zp_ref[1:Lc + 1, :], zp_ref[2:Lc + 2, :]))
    zp_ref[0:Lc, :] = w
    o_ref[0] = zp_ref[pl.ds(0, Lp, stride=2), :]


@jax.jit
def conv_layer_forward(x, w_torch, bias, gamma, beta):
    """x: (B, L, C); w_torch: (C_out, C_in, 3) (PyTorch Conv1d weight layout).

    `bias` is accepted for parameter parity but intentionally NOT used: with
    training-mode BatchNorm (batch statistics) a per-channel constant conv bias
    is exactly cancelled by the mean subtraction.
    """
    del bias
    B, L, C = x.shape
    Lc = L + 2
    Lp = (Lc - 1) // 2 + 1

    x_bf = x.astype(jnp.bfloat16)                                   # half the HBM bytes
    w3 = jnp.transpose(w_torch, (2, 1, 0)).astype(jnp.bfloat16)     # (3, C_in, C_out)

    cparams = pltpu.CompilerParams(
        dimension_semantics=("parallel",),          # batch axis -> 2 TCs on v7x
        vmem_limit_bytes=32 * 1024 * 1024)

    # ---- pass 1: conv + per-batch BN partial statistics -----------------------
    y, stats = pl.pallas_call(
        conv_stats_kernel,
        grid=(B,),
        in_specs=[pl.BlockSpec((1, L, C), lambda b: (b, 0, 0)),
                  pl.BlockSpec((3, C, C), lambda b: (0, 0, 0))],
        out_specs=(pl.BlockSpec((1, Lc, C), lambda b: (b, 0, 0)),
                   pl.BlockSpec((1, 2, C), lambda b: (b, 0, 0))),
        out_shape=(jax.ShapeDtypeStruct((B, Lc, C), jnp.float32),
                   jax.ShapeDtypeStruct((B, 2, C), jnp.float32)),
        scratch_shapes=[pltpu.VMEM((L + 4, C), jnp.bfloat16)],
        compiler_params=cparams,
    )(x_bf, w3)

    # ---- tiny (C,)-sized combine + BN affine folding (plain XLA) --------------
    inv_n = 1.0 / float(B * Lc)
    s = jnp.sum(stats[:, 0, :], axis=0)                             # (C,)
    s2 = jnp.sum(stats[:, 1, :], axis=0)                            # (C,)
    mean = s * inv_n
    var = jnp.maximum(s2 * inv_n - mean * mean, 0.0)
    inv_std = jax.lax.rsqrt(var + 1e-5)
    scale = (gamma * inv_std).reshape(1, C).astype(jnp.float32)
    shift = (beta - mean * gamma * inv_std).reshape(1, C).astype(jnp.float32)

    # ---- pass 2: BN affine + ELU + MaxPool -------------------------------------
    out = pl.pallas_call(
        bn_elu_pool_kernel,
        grid=(B,),
        in_specs=[pl.BlockSpec((1, Lc, C), lambda b: (b, 0, 0)),
                  pl.BlockSpec((1, C), lambda b: (0, 0)),
                  pl.BlockSpec((1, C), lambda b: (0, 0))],
        out_specs=pl.BlockSpec((1, Lp, C), lambda b: (b, 0, 0)),
        out_shape=jax.ShapeDtypeStruct((B, Lp, C), jnp.float32),
        scratch_shapes=[pltpu.VMEM((Lc + 2, C), jnp.float32)],
        compiler_params=cparams,
    )(y, scale, shift)
    return out


def reference(x, w_torch, bias, gamma, beta):
    """Pure-JAX f32 reference of the PyTorch forward (training-mode BatchNorm)."""
    B, L, C = x.shape
    xp = jnp.concatenate([x[:, L - 2:, :], x, x[:, :2, :]], axis=1)          # (B, L+4, C)
    w_kio = jnp.transpose(w_torch, (2, 1, 0))                                # (K, C_in, C_out)
    y = jax.lax.conv_general_dilated(
        xp, w_kio, window_strides=(1,), padding='VALID',
        dimension_numbers=('NWC', 'WIO', 'NWC'),
        precision=jax.lax.Precision.HIGHEST)
    y = y + bias[None, None, :]
    mean = y.mean(axis=(0, 1), keepdims=True)
    var = ((y - mean) ** 2).mean(axis=(0, 1), keepdims=True)
    y = (y - mean) / jnp.sqrt(var + 1e-5) * gamma[None, None, :] + beta[None, None, :]
    y = jax.nn.elu(y)
    y = jax.lax.reduce_window(y, -jnp.inf, jax.lax.max,
                              window_dimensions=(1, 3, 1),
                              window_strides=(1, 2, 1),
                              padding=((0, 0), (1, 1), (0, 0)))
    return y


if __name__ == "__main__":
    B, L, C = 2, 16, 32   # batch=2, seq=16, c_in=d_model=32

    key = jax.random.PRNGKey(0)
    kx, kw, kb = jax.random.split(key, 3)
    x = jax.random.normal(kx, (B, L, C), jnp.float32)

    # deterministic Conv1d-style init: U(-1/sqrt(fan_in), 1/sqrt(fan_in)), fan_in = C*3
    fan_in = C * 3
    bound = 1.0 / (fan_in ** 0.5)
    w_torch = jax.random.uniform(kw, (C, C, 3), jnp.float32, -bound, bound)  # (C_out, C_in, K)
    conv_bias = jax.random.uniform(kb, (C,), jnp.float32, -bound, bound)
    bn_gamma = jnp.ones((C,), jnp.float32)    # PyTorch BatchNorm1d default weight
    bn_beta = jnp.zeros((C,), jnp.float32)    # PyTorch BatchNorm1d default bias

    out = conv_layer_forward(x, w_torch, conv_bias, bn_gamma, bn_beta)
    out = jax.block_until_ready(out)

    expected_shape = (B, (L + 2 - 1) // 2 + 1, C)   # (2, 9, 32)
    assert out.shape == expected_shape, (out.shape, expected_shape)

    # Reference INCLUDES the conv bias; the kernel drops it (training-mode BN
    # cancellation), so this check also validates that equivalence.
    # Tolerance 2e-2 because the conv operands are bf16 on the MXU (f32 acc).
    ref = reference(x, w_torch, conv_bias, bn_gamma, bn_beta)
    max_err = float(jnp.max(jnp.abs(out - ref)))
    assert max_err < 2e-2, f"max abs error {max_err}"

    print("KERNEL_OK")
</pallas_src>

<mosaic_0001>
module attributes {stable_mosaic.version = 11 : i64} {
  func.func @conv_stats_kernel(%arg0: i32, %arg1: memref<1x16x32xbf16, #tpu.memory_space<vmem>>, %arg2: memref<3x32x32xbf16, #tpu.memory_space<vmem>>, %arg3: memref<1x18x32xf32, #tpu.memory_space<vmem>>, %arg4: memref<1x2x32xf32, #tpu.memory_space<vmem>>, %arg5: memref<20x32xbf16, #tpu.memory_space<vmem>>) attributes {dimension_semantics = [#tpu.dimension_semantics<parallel>], iteration_bounds = array<i64: 2>, scalar_prefetch = 0 : i64, scratch_operands = 1 : i64, tpu.core_type = #tpu.core_type<tc>, window_params = [{transform_indices = @transform_0, window_bounds = array<i64: 1, 16, 32>}, {pipeline_mode = #tpu.pipeline_mode<synchronous>, transform_indices = @transform_1, window_bounds = array<i64: 3, 32, 32>}, {transform_indices = @transform_2, window_bounds = array<i64: 1, 18, 32>}, {transform_indices = @transform_3, window_bounds = array<i64: 1, 2, 32>}]} {
    %c0 = arith.constant 0 : index
    %c0_0 = arith.constant 0 : index
    %c0_1 = arith.constant 0 : index
    %0 = vector.load %arg1[%c0, %c0_0, %c0_1] : memref<1x16x32xbf16, #tpu.memory_space<vmem>>, vector<1x16x32xbf16>
    %1 = vector.shape_cast %0 : vector<1x16x32xbf16> to vector<16x32xbf16>
    %c2 = arith.constant 2 : index
    %c0_2 = arith.constant 0 : index
    %2 = vector.load %arg5[%c2, %c0_2] : memref<20x32xbf16, #tpu.memory_space<vmem>>, vector<16x32xbf16>
    tpu.vector_store %arg5[%c2, %c0_2], %1 {strides = array<i32>} : memref<20x32xbf16, #tpu.memory_space<vmem>>, vector<16x32xbf16>,
    %3 = vector.extract_strided_slice %1 {offsets = [14, 0], sizes = [2, 32], strides = [1, 1]} : vector<16x32xbf16> to vector<2x32xbf16>
    %c0_3 = arith.constant 0 : index
    %c0_4 = arith.constant 0 : index
    %4 = vector.load %arg5[%c0_3, %c0_4] : memref<20x32xbf16, #tpu.memory_space<vmem>>, vector<2x32xbf16>
    tpu.vector_store %arg5[%c0_3, %c0_4], %3 {strides = array<i32>} : memref<20x32xbf16, #tpu.memory_space<vmem>>, vector<2x32xbf16>,
    %5 = vector.extract_strided_slice %1 {offsets = [0, 0], sizes = [2, 32], strides = [1, 1]} : vector<16x32xbf16> to vector<2x32xbf16>
    %c18 = arith.constant 18 : index
    %c0_5 = arith.constant 0 : index
    %6 = vector.load %arg5[%c18, %c0_5] : memref<20x32xbf16, #tpu.memory_space<vmem>>, vector<2x32xbf16>
    tpu.vector_store %arg5[%c18, %c0_5], %5 {strides = array<i32>} : memref<20x32xbf16, #tpu.memory_space<vmem>>, vector<2x32xbf16>,
    %c0_6 = arith.constant 0 : index
    %c0_7 = arith.constant 0 : index
    %7 = vector.load %arg5[%c0_6, %c0_7] : memref<20x32xbf16, #tpu.memory_space<vmem>>, vector<18x32xbf16>
    %c0_8 = arith.constant 0 : index
    %c0_9 = arith.constant 0 : index
    %c0_10 = arith.constant 0 : index
    %8 = vector.load %arg2[%c0_8, %c0_9, %c0_10] : memref<3x32x32xbf16, #tpu.memory_space<vmem>>, vector<1x32x32xbf16>
    %9 = vector.shape_cast %8 : vector<1x32x32xbf16> to vector<32x32xbf16>
    %cst = arith.constant dense<0.000000e+00> : vector<18x32xf32>
    %10 = tpu.matmul %7, %9, %cst {dimension_numbers = #tpu.dot_dimension_numbers<[1], [0], [0], [1], [0, 0, 1, 1], [], []>} : vector<18x32xbf16>, vector<32x32xbf16>, vector<18x32xf32> -> vector<18x32xf32>
    %c1 = arith.constant 1 : index
    %c0_11 = arith.constant 0 : index
    %11 = vector.load %arg5[%c1, %c0_11] : memref<20x32xbf16, #tpu.memory_space<vmem>>, vector<18x32xbf16>
    %c1_12 = arith.constant 1 : index
    %c0_13 = arith.constant 0 : index
    %c0_14 = arith.constant 0 : index
    %12 = vector.load %arg2[%c1_12, %c0_13, %c0_14] : memref<3x32x32xbf16, #tpu.memory_space<vmem>>, vector<1x32x32xbf16>
    %13 = vector.shape_cast %12 : vector<1x32x32xbf16> to vector<32x32xbf16>
    %cst_15 = arith.constant dense<0.000000e+00> : vector<18x32xf32>
    %14 = tpu.matmul %11, %13, %cst_15 {dimension_numbers = #tpu.dot_dimension_numbers<[1], [0], [0], [1], [0, 0, 1, 1], [], []>} : vector<18x32xbf16>, vector<32x32xbf16>, vector<18x32xf32> -> vector<18x32xf32>
    %15 = arith.addf %10, %14 : vector<18x32xf32>
    %c2_16 = arith.constant 2 : index
    %c0_17 = arith.constant 0 : index
    %16 = vector.load %arg5[%c2_16, %c0_17] : memref<20x32xbf16, #tpu.memory_space<vmem>>, vector<18x32xbf16>
    %c2_18 = arith.constant 2 : index
    %c0_19 = arith.constant 0 : index
    %c0_20 = arith.constant 0 : index
    %17 = vector.load %arg2[%c2_18, %c0_19, %c0_20] : memref<3x32x32xbf16, #tpu.memory_space<vmem>>, vector<1x32x32xbf16>
    %18 = vector.shape_cast %17 : vector<1x32x32xbf16> to vector<32x32xbf16>
    %cst_21 = arith.constant dense<0.000000e+00> : vector<18x32xf32>
    %19 = tpu.matmul %16, %18, %cst_21 {dimension_numbers = #tpu.dot_dimension_numbers<[1], [0], [0], [1], [0, 0, 1, 1], [], []>} : vector<18x32xbf16>, vector<32x32xbf16>, vector<18x32xf32> -> vector<18x32xf32>
    %20 = arith.addf %15, %19 : vector<18x32xf32>
    %c0_22 = arith.constant 0 : index
    %c0_23 = arith.constant 0 : index
    %c0_24 = arith.constant 0 : index
    %21 = vector.load %arg3[%c0_22, %c0_23, %c0_24] : memref<1x18x32xf32, #tpu.memory_space<vmem>>, vector<1x18x32xf32>
    %22 = vector.shape_cast %21 : vector<1x18x32xf32> to vector<18x32xf32>
    %23 = vector.shape_cast %20 : vector<18x32xf32> to vector<1x18x32xf32>
    tpu.vector_store %arg3[%c0_22, %c0_23, %c0_24], %23 {strides = array<i32>} : memref<1x18x32xf32, #tpu.memory_space<vmem>>, vector<1x18x32xf32>,
    %cst_25 = arith.constant dense<0.000000e+00> : vector<32xf32>
    %24 = vector.multi_reduction <add>, %20, %cst_25 [0] : vector<18x32xf32> to vector<32xf32>
    %25 = vector.shape_cast %24 : vector<32xf32> to vector<1x32xf32>
    %c0_26 = arith.constant 0 : index
    %c0_27 = arith.constant 0 : index
    %c0_28 = arith.constant 0 : index
    %26 = vector.load %arg4[%c0_26, %c0_27, %c0_28] : memref<1x2x32xf32, #tpu.memory_space<vmem>>, vector<1x1x32xf32>
    %27 = vector.shape_cast %26 : vector<1x1x32xf32> to vector<1x32xf32>
    %28 = vector.shape_cast %25 : vector<1x32xf32> to vector<1x1x32xf32>
    tpu.vector_store %arg4[%c0_26, %c0_27, %c0_28], %28 {strides = array<i32>} : memref<1x2x32xf32, #tpu.memory_space<vmem>>, vector<1x1x32xf32>,
    %29 = arith.mulf %20, %20 : vector<18x32xf32>
    %cst_29 = arith.constant dense<0.000000e+00> : vector<32xf32>
    %30 = vector.multi_reduction <add>, %29, %cst_29 [0] : vector<18x32xf32> to vector<32xf32>
    %31 = vector.shape_cast %30 : vector<32xf32> to vector<1x32xf32>
    %c0_30 = arith.constant 0 : index
    %c1_31 = arith.constant 1 : index
    %c0_32 = arith.constant 0 : index
    %32 = vector.load %arg4[%c0_30, %c1_31, %c0_32] : memref<1x2x32xf32, #tpu.memory_space<vmem>>, vector<1x1x32xf32>
    %33 = vector.shape_cast %32 : vector<1x1x32xf32> to vector<1x32xf32>
    %34 = vector.shape_cast %31 : vector<1x32xf32> to vector<1x1x32xf32>
    tpu.vector_store %arg4[%c0_30, %c1_31, %c0_32], %34 {strides = array<i32>} : memref<1x2x32xf32, #tpu.memory_space<vmem>>, vector<1x1x32xf32>,
    return
  }
  func.func @transform_0(%arg0: i32) -> (i32, i32, i32) {
    %c0_i32 = arith.constant 0 : i32
    %c0_i32_0 = arith.constant 0 : i32
    %c0_i32_1 = arith.constant 0 : i32
    return %arg0, %c0_i32, %c0_i32_0 : i32, i32, i32
  }
  func.func @transform_1(%arg0: i32) -> (i32, i32, i32) {
    %c0_i32 = arith.constant 0 : i32
    %c0_i32_0 = arith.constant 0 : i32
    %c0_i32_1 = arith.constant 0 : i32
    %c0_i32_2 = arith.constant 0 : i32
    return %c0_i32, %c0_i32_0, %c0_i32_1 : i32, i32, i32
  }
  func.func @transform_2(%arg0: i32) -> (i32, i32, i32) {
    %c0_i32 = arith.constant 0 : i32
    %c0_i32_0 = arith.constant 0 : i32
    %c0_i32_1 = arith.constant 0 : i32
    return %arg0, %c0_i32, %c0_i32_0 : i32, i32, i32
  }
  func.func @transform_3(%arg0: i32) -> (i32, i32, i32) {
    %c0_i32 = arith.constant 0 : i32
    %c0_i32_0 = arith.constant 0 : i32
    %c0_i32_1 = arith.constant 0 : i32
    return %arg0, %c0_i32, %c0_i32_0 : i32, i32, i32
  }
}

module attributes {stable_mosaic.version = 11 : i64} {
  func.func @bn_elu_pool_kernel(%arg0: i32, %arg1: memref<1x18x32xf32, #tpu.memory_space<vmem>>, %arg2: memref<1x32xf32, #tpu.memory_space<vmem>>, %arg3: memref<1x32xf32, #tpu.memory_space<vmem>>, %arg4: memref<1x9x32xf32, #tpu.memory_space<vmem>>, %arg5: memref<20x32xf32, #tpu.memory_space<vmem>>) attributes {dimension_semantics = [#tpu.dimension_semantics<parallel>], iteration_bounds = array<i64: 2>, scalar_prefetch = 0 : i64, scratch_operands = 1 : i64, tpu.core_type = #tpu.core_type<tc>, window_params = [{transform_indices = @transform_0, window_bounds = array<i64: 1, 18, 32>}, {pipeline_mode = #tpu.pipeline_mode<synchronous>, transform_indices = @transform_1, window_bounds = array<i64: 1, 32>}, {pipeline_mode = #tpu.pipeline_mode<synchronous>, transform_indices = @transform_2, window_bounds = array<i64: 1, 32>}, {transform_indices = @transform_3, window_bounds = array<i64: 1, 9, 32>}]} {
    %c0 = arith.constant 0 : index
    %c0_0 = arith.constant 0 : index
    %c0_1 = arith.constant 0 : index
    %0 = vector.load %arg1[%c0, %c0_0, %c0_1] : memref<1x18x32xf32, #tpu.memory_space<vmem>>, vector<1x18x32xf32>
    %1 = vector.shape_cast %0 : vector<1x18x32xf32> to vector<18x32xf32>
    %c0_2 = arith.constant 0 : index
    %c0_3 = arith.constant 0 : index
    %2 = vector.load %arg2[%c0_2, %c0_3] : memref<1x32xf32, #tpu.memory_space<vmem>>, vector<1x32xf32>
    %3 = vector.broadcast %2 : vector<1x32xf32> to vector<18x32xf32>
    %4 = arith.mulf %1, %3 : vector<18x32xf32>
    %c0_4 = arith.constant 0 : index
    %c0_5 = arith.constant 0 : index
    %5 = vector.load %arg3[%c0_4, %c0_5] : memref<1x32xf32, #tpu.memory_space<vmem>>, vector<1x32xf32>
    %6 = vector.broadcast %5 : vector<1x32xf32> to vector<18x32xf32>
    %7 = arith.addf %4, %6 : vector<18x32xf32>
    %cst = arith.constant 0.000000e+00 : f32
    %8 = vector.broadcast %cst : f32 to vector<18x32xf32>
    %9 = arith.cmpf ogt, %7, %8 : vector<18x32xf32>
    %cst_6 = arith.constant 0.000000e+00 : f32
    %10 = vector.broadcast %cst_6 : f32 to vector<18x32xf32>
    %11 = arith.minimumf %7, %10 : vector<18x32xf32>
    %12 = math.exp %11 : vector<18x32xf32>
    %cst_7 = arith.constant 1.000000e+00 : f32
    %13 = vector.broadcast %cst_7 : f32 to vector<18x32xf32>
    %14 = arith.subf %12, %13 : vector<18x32xf32>
    %15 = arith.select %9, %7, %14 : vector<18x32xi1>, vector<18x32xf32>
    %cst_8 = arith.constant -1.000000e+30 : f32
    %16 = vector.broadcast %cst_8 : f32 to vector<1x32xf32>
    %c0_9 = arith.constant 0 : index
    %c0_10 = arith.constant 0 : index
    %17 = vector.load %arg5[%c0_9, %c0_10] : memref<20x32xf32, #tpu.memory_space<vmem>>, vector<1x32xf32>
    tpu.vector_store %arg5[%c0_9, %c0_10], %16 {strides = array<i32>} : memref<20x32xf32, #tpu.memory_space<vmem>>, vector<1x32xf32>,
    %c19 = arith.constant 19 : index
    %c0_11 = arith.constant 0 : index
    %18 = vector.load %arg5[%c19, %c0_11] : memref<20x32xf32, #tpu.memory_space<vmem>>, vector<1x32xf32>
    tpu.vector_store %arg5[%c19, %c0_11], %16 {strides = array<i32>} : memref<20x32xf32, #tpu.memory_space<vmem>>, vector<1x32xf32>,
    %c1 = arith.constant 1 : index
    %c0_12 = arith.constant 0 : index
    %19 = vector.load %arg5[%c1, %c0_12] : memref<20x32xf32, #tpu.memory_space<vmem>>, vector<18x32xf32>
    tpu.vector_store %arg5[%c1, %c0_12], %15 {strides = array<i32>} : memref<20x32xf32, #tpu.memory_space<vmem>>, vector<18x32xf32>,
    %c0_13 = arith.constant 0 : index
    %c0_14 = arith.constant 0 : index
    %20 = vector.load %arg5[%c0_13, %c0_14] : memref<20x32xf32, #tpu.memory_space<vmem>>, vector<18x32xf32>
    %c1_15 = arith.constant 1 : index
    %c0_16 = arith.constant 0 : index
    %21 = vector.load %arg5[%c1_15, %c0_16] : memref<20x32xf32, #tpu.memory_space<vmem>>, vector<18x32xf32>
    %c2 = arith.constant 2 : index
    %c0_17 = arith.constant 0 : index
    %22 = vector.load %arg5[%c2, %c0_17] : memref<20x32xf32, #tpu.memory_space<vmem>>, vector<18x32xf32>
    %23 = arith.maximumf %21, %22 : vector<18x32xf32>
    %24 = arith.maximumf %20, %23 : vector<18x32xf32>
    %c0_18 = arith.constant 0 : index
    %c0_19 = arith.constant 0 : index
    %25 = vector.load %arg5[%c0_18, %c0_19] : memref<20x32xf32, #tpu.memory_space<vmem>>, vector<18x32xf32>
    tpu.vector_store %arg5[%c0_18, %c0_19], %24 {strides = array<i32>} : memref<20x32xf32, #tpu.memory_space<vmem>>, vector<18x32xf32>,
    %c0_20 = arith.constant 0 : index
    %c0_21 = arith.constant 0 : index
    %26 = tpu.strided_load %arg5[%c0_20, %c0_21] {strides = array<i32: 2, 1>} : memref<20x32xf32, #tpu.memory_space<vmem>>, vector<9x32xf32>
    %c0_22 = arith.constant 0 : index
    %c0_23 = arith.constant 0 : index
    %c0_24 = arith.constant 0 : index
    %27 = vector.load %arg4[%c0_22, %c0_23, %c0_24] : memref<1x9x32xf32, #tpu.memory_space<vmem>>, vector<1x9x32xf32>
    %28 = vector.shape_cast %27 : vector<1x9x32xf32> to vector<9x32xf32>
    %29 = vector.shape_cast %26 : vector<9x32xf32> to vector<1x9x32xf32>
    tpu.vector_store %arg4[%c0_22, %c0_23, %c0_24], %29 {strides = array<i32>} : memref<1x9x32xf32, #tpu.memory_space<vmem>>, vector<1x9x32xf32>,
    return
  }
  func.func @transform_0(%arg0: i32) -> (i32, i32, i32) {
    %c0_i32 = arith.constant 0 : i32
    %c0_i32_0 = arith.constant 0 : i32
    %c0_i32_1 = arith.constant 0 : i32
    return %arg0, %c0_i32, %c0_i32_0 : i32, i32, i32
  }
  func.func @transform_1(%arg0: i32) -> (i32, i32) {
    %c0_i32 = arith.constant 0 : i32
    %c0_i32_0 = arith.constant 0 : i32
    %c0_i32_1 = arith.constant 0 : i32
    return %c0_i32, %c0_i32_0 : i32, i32
  }
  func.func @transform_2(%arg0: i32) -> (i32, i32) {
    %c0_i32 = arith.constant 0 : i32
    %c0_i32_0 = arith.constant 0 : i32
    %c0_i32_1 = arith.constant 0 : i32
    return %c0_i32, %c0_i32_0 : i32, i32
  }
  func.func @transform_3(%arg0: i32) -> (i32, i32, i32) {
    %c0_i32 = arith.constant 0 : i32
    %c0_i32_0 = arith.constant 0 : i32
    %c0_i32_1 = arith.constant 0 : i32
    return %arg0, %c0_i32, %c0_i32_0 : i32, i32, i32
  }
}

</mosaic_0001>

<llo_original>
// kernel: conv_layer_forward.3
$region0: #{conv_layer_forward.3}
  #allocation0 [shape = 'u32[]', space=smem, size = 0x4, offset = 0x4, fixed_abs, tag = 'smem constant byte address 0x4 - core index']
  #allocation1 [shape = 'u32[144,128]{1,0:T(1,128)}', space=vmem, size = 0x12000, scoped, tag = 'internal scratch']
  #allocation2 [shape = 'f32[20,32]{1,0:T(8,128)}', space=vmem, size = 0x3000, scoped, tag = 'scratch operand']
  %s0 = inlined_call_operand.vmem [shape: f32[2,18,32], index: 0, kind: input, shape index: {}]
  %s1 = inlined_call_operand.vmem [shape: f32[1,32], index: 1, kind: input, shape index: {}]
  %s2 = inlined_call_operand.vmem [shape: f32[1,32], index: 2, kind: input, shape index: {}]
  %s3 = inlined_call_operand.vmem [shape: f32[2,9,32], index: 3, kind: output, shape index: {}]
  %s4 = sld [smem:[#allocation0]]
  $region45: #{conv_layer_forward.3} parent=0
    _
  %s6 = ssub.s32 1, %s4
  %s7 = scalar_select 0, %s6, %s4
  loop: start=0, step=1, limit=4
  $region2: #{conv_layer_forward.3} parent=0 // loop_pre_header
    _
  $region3: #{conv_layer_forward.3} parent=0 // loop_header
    %s9 = sphi 0, %s13
    %p10 = scmp.ge.s32.totalorder %s9, 4
    %s19 = sphi 0, %s21
    %s22 = sphi 0, %s19
    %s23 = sphi 0, %s22
    %s39 = sphi 0, %s23
    %s43 = sphi 0, %s43
    %s45 = sphi 0, %s43
    %s46 = sphi 0, %s45
    %s60 = sphi 0, %s46
    %s64 = sphi 0, %s64
    %s66 = sphi 0, %s64
    %s67 = sphi 0, %s66
    %s81 = sphi 0, %s67
    %s87 = sphi 0, %s89
    %s90 = sphi 0, %s87
    %s91 = sphi 0, %s90
    %s107 = sphi 0, %s91
  $region4: #{conv_layer_forward.3} parent=0 // loop_header_branch
    %12 = sbr.rel (%p10) target = $region8
  $region5: #{conv_layer_forward.3} parent=0 // loop_body
    %s14 = ssub.s32 %s9, 1
    %s15 = ssub.s32 %s9, 2
    %s16 = sadd.s32 %s9, 1
    %s17 = ssub.s32 %s9, %s16
    %p18 = scmp.eq.s32.totalorder %s17, 0
    %s20 = sadd.s32 %s19, 1
    %s21 = scalar_select %p18, %s19, %s20
    %p24 = pneg %p18
    %p25 = scmp.eq.s32.totalorder %s9, 1
    %p26 = por %p24, %p25
    %p27 = scmp.ne.s32.totalorder %s19, %s22
    %p28 = scmp.eq.s32.totalorder %s9, 0
    %p29 = por %p27, %p28
    %p30 = scmp.ne.s32.totalorder %s19, %s22
    %p31 = scmp.eq.s32.totalorder %s14, 1
    %p32 = por %p30, %p31
    %p33 = scmp.ne.s32.totalorder %s22, %s23
    %p34 = scmp.eq.s32.totalorder %s14, 0
    %p35 = por %p33, %p34
    %p36 = scmp.ne.s32.totalorder %s22, %s23
    %p37 = scmp.eq.s32.totalorder %s15, 1
    %p38 = por %p36, %p37
    %p40 = scmp.ne.s32.totalorder %s23, %s39
    %p41 = scmp.eq.s32.totalorder %s15, 0
    %p42 = por %p40, %p41
    %s44 = sadd.s32 %s43, 1
    %p47 = scmp.eq.s32.totalorder %s9, 1
    %p48 = scmp.ne.s32.totalorder %s43, %s45
    %p49 = scmp.eq.s32.totalorder %s9, 0
    %p50 = por %p48, %p49
    %p51 = scmp.ne.s32.totalorder %s43, %s45
    %p52 = scmp.eq.s32.totalorder %s14, 1
    %p53 = por %p51, %p52
    %p54 = scmp.ne.s32.totalorder %s45, %s46
    %p55 = scmp.eq.s32.totalorder %s14, 0
    %p56 = por %p54, %p55
    %p57 = scmp.ne.s32.totalorder %s45, %s46
    %p58 = scmp.eq.s32.totalorder %s15, 1
    %p59 = por %p57, %p58
    %p61 = scmp.ne.s32.totalorder %s46, %s60
    %p62 = scmp.eq.s32.totalorder %s15, 0
    %p63 = por %p61, %p62
    %s65 = sadd.s32 %s64, 1
    %p68 = scmp.eq.s32.totalorder %s9, 1
    %p69 = scmp.ne.s32.totalorder %s64, %s66
    %p70 = scmp.eq.s32.totalorder %s9, 0
    %p71 = por %p69, %p70
    %p72 = scmp.ne.s32.totalorder %s64, %s66
    %p73 = scmp.eq.s32.totalorder %s14, 1
    %p74 = por %p72, %p73
    %p75 = scmp.ne.s32.totalorder %s66, %s67
    %p76 = scmp.eq.s32.totalorder %s14, 0
    %p77 = por %p75, %p76
    %p78 = scmp.ne.s32.totalorder %s66, %s67
    %p79 = scmp.eq.s32.totalorder %s15, 1
    %p80 = por %p78, %p79
    %p82 = scmp.ne.s32.totalorder %s67, %s81
    %p83 = scmp.eq.s32.totalorder %s15, 0
    %p84 = por %p82, %p83
    %s85 = ssub.s32 %s9, %s16
    %p86 = scmp.eq.s32.totalorder %s85, 0
    %s88 = sadd.s32 %s87, 1
    %s89 = scalar_select %p86, %s87, %s88
    %p92 = pneg %p86
    %p93 = scmp.eq.s32.totalorder %s9, 1
    %p94 = por %p92, %p93
    %p95 = scmp.ne.s32.totalorder %s87, %s90
    %p96 = scmp.eq.s32.totalorder %s9, 0
    %p97 = por %p95, %p96
    %p98 = scmp.ne.s32.totalorder %s87, %s90
    %p99 = scmp.eq.s32.totalorder %s14, 1
    %p100 = por %p98, %p99
    %p101 = scmp.ne.s32.totalorder %s90, %s91
    %p102 = scmp.eq.s32.totalorder %s14, 0
    %p103 = por %p101, %p102
    %p104 = scmp.ne.s32.totalorder %s90, %s91
    %p105 = scmp.eq.s32.totalorder %s15, 1
    %p106 = por %p104, %p105
    %p108 = scmp.ne.s32.totalorder %s91, %s107
    %p109 = scmp.eq.s32.totalorder %s15, 0
    %p110 = por %p108, %p109
    %p111 = scmp.le.s32.totalorder 1, %s9
    %p112 = scmp.lt.s32.totalorder %s9, 3
    %p113 = pnand %p111, %p112
    %p114 = pneg %p113
    // Predicated region
    $region9: #{conv_layer_forward.3} parent=5 // pred_check
      _
    $region10: #{conv_layer_forward.3} parent=5 // pred_check_branch
      %116 = sbr.rel (%p113) target = $region12
    $region11: #{conv_layer_forward.3} parent=5 // pred_region
      %s117 = ssub.s32 %s9, 1
      // Predicated region
      $region13: #{conv_layer_forward.3} parent=11 // pred_check
        %p118 = pneg %p56
      $region14: #{conv_layer_forward.3} parent=11 // pred_check_branch
        %120 = sbr.rel (%p118) target = $region16
      $region15: #{conv_layer_forward.3} parent=11 // pred_region
        _
      $region16: #{conv_layer_forward.3} parent=11 // pred_fallthru
        _
      // Predicated region
      $region17: #{conv_layer_forward.3} parent=11 // pred_check
        %p121 = pneg %p77
      $region18: #{conv_layer_forward.3} parent=11 // pred_check_branch
        %123 = sbr.rel (%p121) target = $region20
      $region19: #{conv_layer_forward.3} parent=11 // pred_region
        _
      $region20: #{conv_layer_forward.3} parent=11 // pred_fallthru
        _
    $region12: #{conv_layer_forward.3} parent=5 // pred_fallthru
      _
    %p124 = scmp.lt.s32.totalorder %s9, 2
    // Predicated region
    $region21: #{conv_layer_forward.3} parent=5 // pred_check
      %p125 = pneg %p124
    $region22: #{conv_layer_forward.3} parent=5 // pred_check_branch
      %127 = sbr.rel (%p125) target = $region24
    $region23: #{conv_layer_forward.3} parent=5 // pred_region
      // Predicated region
      $region25: #{conv_layer_forward.3} parent=23 // pred_check
        %p128 = pneg %p29
      $region26: #{conv_layer_forward.3} parent=23 // pred_check_branch
        %130 = sbr.rel (%p128) target = $region28
      $region27: #{conv_layer_forward.3} parent=23 // pred_region
        %p131 = scmp.lt.s32.totalorder %s9, 1
        %s132 = scalar_select %p131, %s9, 1
        %s133 = smul.addr %s132, 3
        %s134 = smul.addr %s133, 8
        %s135 = scalar_lea.vmem %s0, %s134
      $region28: #{conv_layer_forward.3} parent=23 // pred_fallthru
        _
    $region24: #{conv_layer_forward.3} parent=5 // pred_fallthru
      _
    %p136 = scmp.le.s32.totalorder 1, %s9
    %p137 = scmp.lt.s32.totalorder %s9, 3
    %p138 = pnand %p136, %p137
    %p139 = pneg %p138
    // Predicated region
    $region29: #{conv_layer_forward.3} parent=5 // pred_check
      _
    $region30: #{conv_layer_forward.3} parent=5 // pred_check_branch
      %141 = sbr.rel (%p138) target = $region32
    $region31: #{conv_layer_forward.3} parent=5 // pred_region
      %s142 = ssub.s32 %s9, 1
      %p143 = scmp.lt.s32.totalorder %s14, 1
      %s144 = scalar_select %p143, %s14, 1
      %s145 = smul.addr %s144, 3
      %s146 = smul.addr %s145, 8
      %s147 = scalar_lea.vmem %s0, %s146
      %p148 = pneg %p35
      %p149 = pneg %p32
      %p150 = pneg %p56
      %p151 = pneg %p53
      %p152 = pneg %p77
      %p153 = pneg %p74
      %p154 = pneg %p103
      %p155 = pneg %p100
      %p156 = scmp.lt.s32.totalorder %s14, 1
      %s157 = scalar_select %p156, %s14, 1
      %s158 = smul.addr %s157, 2
      %s159 = smul.addr %s158, 8
      %s160 = scalar_lea.vmem %s3, %s159
      %p161 = scmp.lt.s32.totalorder %s14, 1
      %s162 = scalar_select %p161, %s14, 1
      %s163 = smul.addr %s162, 3
      %s164 = smul.addr %s163, 8
      %s165 = scalar_lea.vmem %s0, %s164
      %p166 = scmp.lt.s32.totalorder %s14, 1
      %s167 = scalar_select %p166, %s14, 1
      %s168 = smul.addr %s167, 2
      %s169 = smul.addr %s168, 8
      %s170 = scalar_lea.vmem %s3, %s169
      %v171 = vld [vmem:[%s165] sm:$0xff]
      %v172 = vld [vmem:[%s165 + $0x8] sm:$0xff]
      %v173 = vld [vmem:[%s165 + $0x10] sm:$0x3]
      %v174 = vld [vmem:[%s1] sm:$0x1]
      %v176 = vlaneseq
      %v177 = vshrl.u32 %v176, 7
      %v178 = vsub.s32 0, %v177
      %v179 = vrot.slane %v174, %v178
      %v181 = vmul.f32 %v171, %v179
      %v182 = vmul.f32 %v172, %v179
      %v183 = vmul.f32 %v173, %v179
      %v184 = vld [vmem:[%s2] sm:$0x1]
      %v186 = vlaneseq
      %v187 = vshrl.u32 %v186, 7
      %v188 = vsub.s32 0, %v187
      %v189 = vrot.slane %v184, %v188
      %v191 = vadd.f32 %v181, %v189
      %v192 = vadd.f32 %v182, %v189
      %v193 = vadd.f32 %v183, %v189
      %vm194 = vcmp.gt.f32.partialorder %v191, 0.0
      %vm195 = vcmp.gt.f32.partialorder %v192, 0.0
      %vm196 = vcmp.gt.f32.partialorder %v193, 0.0
      %v197 = vmin.f32 %v191, 0.0
      %v198 = vmin.f32 %v192, 0.0
      %v199 = vmin.f32 %v193, 0.0
      %v200 = vmul.f32 %v197, 1.442695
      %v201 = vpow.pop %v200
      %v202 = vmul.f32 %v198, 1.442695
      %v203 = vpow.pop %v202
      %v204 = vmul.f32 %v199, 1.442695
      %v205 = vpow.pop %v204
      %v206 = vsub.f32 %v201, 1.0
      %v207 = vsub.f32 %v203, 1.0
      %v208 = vsub.f32 %v205, 1.0
      %v209 = vsel %vm194, %v191, %v206
      %v210 = vsel %vm195, %v192, %v207
      %v211 = vsel %vm196, %v193, %v208
      %vm212 = vcmask 253952
      %213 = vst.msk [vmem:[#allocation2] sm:$0x1] %vm212, -1e+30
      %214 = vst.msk [vmem:[#allocation2 + $0x13] sm:$0x1] %vm212, -1e+30
      %vm215 = vcmask 261120
      %216 = vst.msk [vmem:[#allocation2 + $0x1] sm:$0xff] %vm215, %v209
      %217 = vst.msk [vmem:[#allocation2 + $0x9] sm:$0xff] %vm215, %v210
      %vm218 = vcmask 254976
      %219 = vst.msk [vmem:[#allocation2 + $0x11] sm:$0x3] %vm218, %v211
      %v220 = vld [vmem:[#allocation2] sm:$0xff]
      %v221 = vld [vmem:[#allocation2 + $0x8] sm:$0xff]
      %v222 = vld [vmem:[#allocation2 + $0x10] sm:$0x3]
      %v223 = vld [vmem:[#allocation2 + $0x1] sm:$0xff]
      %v224 = vld [vmem:[#allocation2 + $0x9] sm:$0xff]
      %v225 = vld [vmem:[#allocation2 + $0x11] sm:$0x3]
      %v226 = vld [vmem:[#allocation2 + $0x2] sm:$0xff]
      %v227 = vld [vmem:[#allocation2 + $0xa] sm:$0xff]
      %v228 = vld [vmem:[#allocation2 + $0x12] sm:$0x3]
      %v229 = vmax.f32 %v223, %v226
      %v230 = vmax.f32 %v224, %v227
      %v231 = vmax.f32 %v225, %v228
      %v232 = vmax.f32 %v220, %v229
      %v233 = vmax.f32 %v221, %v230
      %v234 = vmax.f32 %v222, %v231
      %235 = vst.msk [vmem:[#allocation2] sm:$0xff] %vm215, %v232
      %236 = vst.msk [vmem:[#allocation2 + $0x8] sm:$0xff] %vm215, %v233
      %237 = vst.msk [vmem:[#allocation2 + $0x10] sm:$0x3] %vm218, %v234
      %v238 = vld [vmem:[#allocation2] ss:$2 sm:$0xff]
      %s239 = scalar_lea.vmem [#allocation2], 16
      %v240 = vld [vmem:[%s239] ss:$2 sm:$0x1]
      %241 = vst.msk [vmem:[%s170] sm:$0xff] %vm215, %v238
      %242 = vst.msk [vmem:[%s170 + $0x8] sm:$0x1] %vm212, %v240
      %p243 = scmp.lt.s32.totalorder %s14, 1
      %s244 = scalar_select %p243, %s14, 1
      %s245 = smul.addr %s244, 2
      %s246 = smul.addr %s245, 8
      %s247 = scalar_lea.vmem %s3, %s246
      // Predicated region
      $region33: #{conv_layer_forward.3} parent=31 // pred_check
        %p248 = pneg %p100
      $region34: #{conv_layer_forward.3} parent=31 // pred_check_branch
        %250 = sbr.rel (%p248) target = $region36
      $region35: #{conv_layer_forward.3} parent=31 // pred_region
        _
      $region36: #{conv_layer_forward.3} parent=31 // pred_fallthru
        _
    $region32: #{conv_layer_forward.3} parent=5 // pred_fallthru
      _
    %p251 = scmp.le.s32.totalorder 2, %s9
    // Predicated region
    $region37: #{conv_layer_forward.3} parent=5 // pred_check
      %p252 = pneg %p251
    $region38: #{conv_layer_forward.3} parent=5 // pred_check_branch
      %254 = sbr.rel (%p252) target = $region40
    $region39: #{conv_layer_forward.3} parent=5 // pred_region
      %s255 = ssub.s32 %s9, 2
      // Predicated region
      $region41: #{conv_layer_forward.3} parent=39 // pred_check
        %p256 = pneg %p106
      $region42: #{conv_layer_forward.3} parent=39 // pred_check_branch
        %258 = sbr.rel (%p256) target = $region44
      $region43: #{conv_layer_forward.3} parent=39 // pred_region
        %p259 = scmp.lt.s32.totalorder %s15, 1
        %s260 = scalar_select %p259, %s15, 1
        %s261 = smul.addr %s260, 2
        %s262 = smul.addr %s261, 8
        %s263 = scalar_lea.vmem %s3, %s262
      $region44: #{conv_layer_forward.3} parent=39 // pred_fallthru
        _
    $region40: #{conv_layer_forward.3} parent=5 // pred_fallthru
      _
  $region6: #{conv_layer_forward.3} parent=0 // loop_footer
    %s13 = sadd.s32 1, %s9
  $region7: #{conv_layer_forward.3} parent=0 // loop_footer_branch
    %8 = sbr.rel target = $region3
  $region8: #{conv_layer_forward.3} parent=0 // loop_exit
    _

// kernel: conv_layer_forward.2
$region0: #{conv_layer_forward.2}
  #allocation0 [shape = 'u32[]', space=smem, size = 0x4, offset = 0x4, fixed_abs, tag = 'smem constant byte address 0x4 - core index']
  #allocation1 [shape = 'u32[144,128]{1,0:T(1,128)}', space=vmem, size = 0x12000, scoped, tag = 'internal scratch']
  #allocation2 [shape = 'bf16[20,32]{1,0:T(8,128)(2,1)}', space=vmem, size = 0x1800, scoped, tag = 'scratch operand']
  %s0 = inlined_call_operand.vmem [shape: bf16[2,16,32], index: 0, kind: input, shape index: {}]
  %s1 = inlined_call_operand.vmem [shape: bf16[3,32,32], index: 1, kind: input, shape index: {}]
  %s2 = inlined_call_operand.vmem [shape: f32[2,18,32], index: 2, kind: output, shape index: {0}]
  %s3 = inlined_call_operand.vmem [shape: f32[2,2,32], index: 3, kind: output, shape index: {1}]
  %4 = xla_tuple %s2, %s3
  %s5 = sld [smem:[#allocation0]]
  $region49: #{conv_layer_forward.2} parent=0
    _
  %s7 = ssub.s32 1, %s5
  %s8 = scalar_select 0, %s7, %s5
  loop: start=0, step=1, limit=4
  $region2: #{conv_layer_forward.2} parent=0 // loop_pre_header
    _
  $region3: #{conv_layer_forward.2} parent=0 // loop_header
    %s10 = sphi 0, %s14
    %p11 = scmp.ge.s32.totalorder %s10, 4
    %s20 = sphi 0, %s22
    %s23 = sphi 0, %s20
    %s24 = sphi 0, %s23
    %s40 = sphi 0, %s24
    %s44 = sphi 0, %s44
    %s46 = sphi 0, %s44
    %s47 = sphi 0, %s46
    %s61 = sphi 0, %s47
    %s67 = sphi 0, %s69
    %s70 = sphi 0, %s67
    %s71 = sphi 0, %s70
    %s87 = sphi 0, %s71
    %s93 = sphi 0, %s95
    %s96 = sphi 0, %s93
    %s97 = sphi 0, %s96
    %s113 = sphi 0, %s97
  $region4: #{conv_layer_forward.2} parent=0 // loop_header_branch
    %13 = sbr.rel (%p11) target = $region8
  $region5: #{conv_layer_forward.2} parent=0 // loop_body
    %s15 = ssub.s32 %s10, 1
    %s16 = ssub.s32 %s10, 2
    %s17 = sadd.s32 %s10, 1
    %s18 = ssub.s32 %s10, %s17
    %p19 = scmp.eq.s32.totalorder %s18, 0
    %s21 = sadd.s32 %s20, 1
    %s22 = scalar_select %p19, %s20, %s21
    %p25 = pneg %p19
    %p26 = scmp.eq.s32.totalorder %s10, 1
    %p27 = por %p25, %p26
    %p28 = scmp.ne.s32.totalorder %s20, %s23
    %p29 = scmp.eq.s32.totalorder %s10, 0
    %p30 = por %p28, %p29
    %p31 = scmp.ne.s32.totalorder %s20, %s23
    %p32 = scmp.eq.s32.totalorder %s15, 1
    %p33 = por %p31, %p32
    %p34 = scmp.ne.s32.totalorder %s23, %s24
    %p35 = scmp.eq.s32.totalorder %s15, 0
    %p36 = por %p34, %p35
    %p37 = scmp.ne.s32.totalorder %s23, %s24
    %p38 = scmp.eq.s32.totalorder %s16, 1
    %p39 = por %p37, %p38
    %p41 = scmp.ne.s32.totalorder %s24, %s40
    %p42 = scmp.eq.s32.totalorder %s16, 0
    %p43 = por %p41, %p42
    %s45 = sadd.s32 %s44, 1
    %p48 = scmp.eq.s32.totalorder %s10, 1
    %p49 = scmp.ne.s32.totalorder %s44, %s46
    %p50 = scmp.eq.s32.totalorder %s10, 0
    %p51 = por %p49, %p50
    %p52 = scmp.ne.s32.totalorder %s44, %s46
    %p53 = scmp.eq.s32.totalorder %s15, 1
    %p54 = por %p52, %p53
    %p55 = scmp.ne.s32.totalorder %s46, %s47
    %p56 = scmp.eq.s32.totalorder %s15, 0
    %p57 = por %p55, %p56
    %p58 = scmp.ne.s32.totalorder %s46, %s47
    %p59 = scmp.eq.s32.totalorder %s16, 1
    %p60 = por %p58, %p59
    %p62 = scmp.ne.s32.totalorder %s47, %s61
    %p63 = scmp.eq.s32.totalorder %s16, 0
    %p64 = por %p62, %p63
    %s65 = ssub.s32 %s10, %s17
    %p66 = scmp.eq.s32.totalorder %s65, 0
    %s68 = sadd.s32 %s67, 1
    %s69 = scalar_select %p66, %s67, %s68
    %p72 = pneg %p66
    %p73 = scmp.eq.s32.totalorder %s10, 1
    %p74 = por %p72, %p73
    %p75 = scmp.ne.s32.totalorder %s67, %s70
    %p76 = scmp.eq.s32.totalorder %s10, 0
    %p77 = por %p75, %p76
    %p78 = scmp.ne.s32.totalorder %s67, %s70
    %p79 = scmp.eq.s32.totalorder %s15, 1
    %p80 = por %p78, %p79
    %p81 = scmp.ne.s32.totalorder %s70, %s71
    %p82 = scmp.eq.s32.totalorder %s15, 0
    %p83 = por %p81, %p82
    %p84 = scmp.ne.s32.totalorder %s70, %s71
    %p85 = scmp.eq.s32.totalorder %s16, 1
    %p86 = por %p84, %p85
    %p88 = scmp.ne.s32.totalorder %s71, %s87
    %p89 = scmp.eq.s32.totalorder %s16, 0
    %p90 = por %p88, %p89
    %s91 = ssub.s32 %s10, %s17
    %p92 = scmp.eq.s32.totalorder %s91, 0
    %s94 = sadd.s32 %s93, 1
    %s95 = scalar_select %p92, %s93, %s94
    %p98 = pneg %p92
    %p99 = scmp.eq.s32.totalorder %s10, 1
    %p100 = por %p98, %p99
    %p101 = scmp.ne.s32.totalorder %s93, %s96
    %p102 = scmp.eq.s32.totalorder %s10, 0
    %p103 = por %p101, %p102
    %p104 = scmp.ne.s32.totalorder %s93, %s96
    %p105 = scmp.eq.s32.totalorder %s15, 1
    %p106 = por %p104, %p105
    %p107 = scmp.ne.s32.totalorder %s96, %s97
    %p108 = scmp.eq.s32.totalorder %s15, 0
    %p109 = por %p107, %p108
    %p110 = scmp.ne.s32.totalorder %s96, %s97
    %p111 = scmp.eq.s32.totalorder %s16, 1
    %p112 = por %p110, %p111
    %p114 = scmp.ne.s32.totalorder %s97, %s113
    %p115 = scmp.eq.s32.totalorder %s16, 0
    %p116 = por %p114, %p115
    %p117 = scmp.le.s32.totalorder 1, %s10
    %p118 = scmp.lt.s32.totalorder %s10, 3
    %p119 = pnand %p117, %p118
    %p120 = pneg %p119
    // Predicated region
    $region9: #{conv_layer_forward.2} parent=5 // pred_check
      _
    $region10: #{conv_layer_forward.2} parent=5 // pred_check_branch
      %122 = sbr.rel (%p119) target = $region12
    $region11: #{conv_layer_forward.2} parent=5 // pred_region
      %s123 = ssub.s32 %s10, 1
      // Predicated region
      $region13: #{conv_layer_forward.2} parent=11 // pred_check
        %p124 = pneg %p57
      $region14: #{conv_layer_forward.2} parent=11 // pred_check_branch
        %126 = sbr.rel (%p124) target = $region16
      $region15: #{conv_layer_forward.2} parent=11 // pred_region
        _
      $region16: #{conv_layer_forward.2} parent=11 // pred_fallthru
        _
    $region12: #{conv_layer_forward.2} parent=5 // pred_fallthru
      _
    %p127 = scmp.lt.s32.totalorder %s10, 2
    // Predicated region
    $region17: #{conv_layer_forward.2} parent=5 // pred_check
      %p128 = pneg %p127
    $region18: #{conv_layer_forward.2} parent=5 // pred_check_branch
      %130 = sbr.rel (%p128) target = $region20
    $region19: #{conv_layer_forward.2} parent=5 // pred_region
      // Predicated region
      $region21: #{conv_layer_forward.2} parent=19 // pred_check
        %p131 = pneg %p30
      $region22: #{conv_layer_forward.2} parent=19 // pred_check_branch
        %133 = sbr.rel (%p131) target = $region24
      $region23: #{conv_layer_forward.2} parent=19 // pred_region
        %p134 = scmp.lt.s32.totalorder %s10, 1
        %s135 = scalar_select %p134, %s10, 1
        %s136 = smul.addr %s135, 2
        %s137 = smul.addr %s136, 4
        %s138 = scalar_lea.vmem %s0, %s137
      $region24: #{conv_layer_forward.2} parent=19 // pred_fallthru
        _
    $region20: #{conv_layer_forward.2} parent=5 // pred_fallthru
      _
    %p139 = scmp.le.s32.totalorder 1, %s10
    %p140 = scmp.lt.s32.totalorder %s10, 3
    %p141 = pnand %p139, %p140
    %p142 = pneg %p141
    // Predicated region
    $region25: #{conv_layer_forward.2} parent=5 // pred_check
      _
    $region26: #{conv_layer_forward.2} parent=5 // pred_check_branch
      %144 = sbr.rel (%p141) target = $region28
    $region27: #{conv_layer_forward.2} parent=5 // pred_region
      %s145 = ssub.s32 %s10, 1
      %p146 = scmp.lt.s32.totalorder %s15, 1
      %s147 = scalar_select %p146, %s15, 1
      %s148 = smul.addr %s147, 2
      %s149 = smul.addr %s148, 4
      %s150 = scalar_lea.vmem %s0, %s149
      %p151 = pneg %p36
      %p152 = pneg %p33
      %p153 = pneg %p57
      %p154 = pneg %p54
      %p155 = pneg %p83
      %p156 = pneg %p80
      %p157 = scmp.lt.s32.totalorder %s15, 1
      %s158 = scalar_select %p157, %s15, 1
      %s159 = smul.addr %s158, 3
      %s160 = smul.addr %s159, 8
      %s161 = scalar_lea.vmem %s2, %s160
      %p162 = pneg %p109
      %p163 = pneg %p106
      %p164 = scmp.lt.s32.totalorder %s15, 1
      %s165 = scalar_select %p164, %s15, 1
      %s166 = smul.addr %s165, 2
      %s167 = scalar_lea.vmem %s3, %s166
      %p168 = scmp.lt.s32.totalorder %s15, 1
      %s169 = scalar_select %p168, %s15, 1
      %s170 = smul.addr %s169, 2
      %s171 = smul.addr %s170, 4
      %s172 = scalar_lea.vmem %s0, %s171
      %p173 = scmp.lt.s32.totalorder %s15, 1
      %s174 = scalar_select %p173, %s15, 1
      %s175 = smul.addr %s174, 3
      %s176 = smul.addr %s175, 8
      %s177 = scalar_lea.vmem %s2, %s176
      %p178 = scmp.lt.s32.totalorder %s15, 1
      %s179 = scalar_select %p178, %s15, 1
      %s180 = smul.addr %s179, 2
      %s181 = scalar_lea.vmem %s3, %s180
      %v183 = vld [vmem:[%s172] sm:$0xf]
      %v184 = vld [vmem:[%s172 + $0x4] sm:$0xf]
      %vm187 = vcmask 1040384
      %vm188 = vcmask 1044484
      %vm189 = vmor %vm187, %vm188
      %v190 = vrot.slane %v183, 7
      %v191 = vrot.slane %v190, 4
      %v192 = vrot.slane %v184, 7
      %v193 = vsel %vm189, %v191, %v192
      %v194 = vrot.slane %v192, 4
      %vm198 = vcmask 257025
      %199 = vst.msk [vmem:[#allocation2] sm:$0xe] %vm198, %v190
      %vm200 = vcmask 257024
      %201 = vst.msk [vmem:[#allocation2 + $0x4] sm:$0xf] %vm200, %v193
      %vm202 = vcmask 253952
      %203 = vst.msk [vmem:[#allocation2 + $0x8] sm:$0x1] %vm202, %v194
      %204 = vst.msk [vmem:[#allocation2] sm:$0x1] %vm202, %v194
      %vm205 = vcmask 254977
      %206 = vst.msk [vmem:[#allocation2 + $0x8] sm:$0x2] %vm205, %v190
      %v207 = vld [vmem:[#allocation2] sm:$0xf]
      %v208 = vld [vmem:[#allocation2 + $0x4] sm:$0xf]
      %v209 = vld [vmem:[#allocation2 + $0x8] sm:$0x1]
      %v210 = vld [vmem:[%s1] sm:$0xf]
      %v211 = vld [vmem:[%s1 + $0x4] sm:$0xf]
      %v212 = vld [vmem:[%s1 + $0x8] sm:$0xf]
      %v213 = vld [vmem:[%s1 + $0xc] sm:$0xf]
      %v214 = vld [vmem:[#allocation2 + $0x8] sm:$0x3]
      %s215 = scalar_lea.vmem %s1, 16
      %v216 = vld [vmem:[%s215] sm:$0xf]
      %v217 = vld [vmem:[%s215 + $0x4] sm:$0xf]
      %v218 = vld [vmem:[%s215 + $0x8] sm:$0xf]
      %v219 = vld [vmem:[%s215 + $0xc] sm:$0xf]
      %v223 = vunpack.c.l.b16 %v207
      %v224 = vunpack.c.l.b16 %v208
      %v225 = vunpack.c.l.b16 %v214
      %v226 = vpack.c.b16 %v224, %v223
      %v227 = vpack.c.b16 %v225, %v225
      %vm228 = vsmask.f32 7424
      %v230 = vshrl.u32 %v226, 16
      %v232 = vshll.u32 %v226, 16
      %v234 = vrot.slane %v232, 1
      %v235 = vor.u32 %v230, %v234
      %v237 = vshll.u32 %v227, 16
      %v239 = vrot.slane %v237, 1
      %v240 = vsel %vm228, %v235, %v239
      %v241 = vshrl.u32 %v227, 16
      %v243 = vor.u32 %v241, %v239
      %v248 = vunpack.c.l.b16 %v216
      %v249 = vunpack.c.l.b16 %v217
      %v250 = vunpack.c.l.b16 %v218
      %v251 = vunpack.c.l.b16 %v219
      %v252 = vpack.c.b16 %v249, %v248
      %v253 = vpack.c.b16 %v251, %v250
      %vm256 = vcmask 261120
      %v258 = vsel %vm256, %v240, 0
      %v261 = vsel %vm256, %v243, 0
      %263 = vmatprep.subr.bf16.mxu0 0
      %264 = vmatpush1.bf16.msra.mxu0 %v252
      %265 = vmatprep.subr.bf16.mxu0 0
      %266 = vmatpush1.bf16.msra.mxu0 %v253
      %267 = vmatprep.subr.bf16.mxu0 0
      %268 = vmatpush1.bf16.msra.mxu0 0
      %269 = vmatprep.subr.bf16.mxu0 0
      %270 = vmatpush1.bf16.msra.mxu0 0
      %271 = vmatprep.subr.bf16.mxu0 0
      %272 = vmatpush1.bf16.msra.mxu0 0
      %273 = vmatprep.subr.bf16.mxu0 0
      %274 = vmatpush1.bf16.msra.mxu0 0
      %275 = vmatprep.subr.bf16.mxu0 0
      %276 = vmatpush1.bf16.msra.mxu0 0
      %277 = vmatprep.subr.bf16.mxu0 0
      %278 = vmatpush1.bf16.msra.mxu0 0
      %279 = vmatprep.subr.bf16.mxu0 0
      %280 = vmatpush1.bf16.msra.mxu0 0
      %281 = vmatprep.subr.bf16.mxu0 0
      %282 = vmatpush1.bf16.msra.mxu0 0
      %283 = vmatprep.subr.bf16.mxu0 0
      %284 = vmatpush1.bf16.msra.mxu0 0
      %285 = vmatprep.subr.bf16.mxu0 0
      %286 = vmatpush1.bf16.msra.mxu0 0
      %287 = vmatprep.subr.bf16.mxu0 0
      %288 = vmatpush1.bf16.msra.mxu0 0
      %289 = vmatprep.subr.bf16.mxu0 0
      %290 = vmatpush1.bf16.msra.mxu0 0
      %291 = vmatprep.subr.bf16.mxu0 0
      %292 = vmatpush1.bf16.msra.mxu0 0
      %293 = vmatprep.subr.bf16.mxu0 0
      %294 = vmatpush1.bf16.msra.mxu0 0
      %295 = vmatprep.mubr.bf16.mxu0 0
      %296 = vmatmul.mubr.bf16.gmra.mrb[0].mxu0 %v258
      %v297 = vpop.f32.mrb[0].mxu0
      %v298 = vadd.f32 0.0, %v297
      %v299 = vpop.f32.mrb[0].mxu0
      %v300 = vpop.f32.mrb[0].mxu0
      %v301 = vadd.f32 0.0, %v300
      %v302 = vpop.f32.mrb[0].mxu0
      %303 = vmatprep.mubr.bf16.mxu0 0
      %304 = vmatmul.mubr.bf16.gmra.mrb[0].mxu0 %v261
      %v305 = vpop.f32.mrb[0].mxu0
      %v306 = vadd.f32 0.0, %v305
      %v307 = vpop.f32.mrb[0].mxu0
      %v308 = vpop.f32.mrb[0].mxu0
      %v309 = vpop.f32.mrb[0].mxu0
      %310 = vdwg.mxu0
      %v312 = vunpack.c.l.b16 %v209
      %v313 = vpack.c.b16 %v312, %v312
      %v318 = vunpack.c.l.b16 %v210
      %v319 = vunpack.c.l.b16 %v211
      %v320 = vunpack.c.l.b16 %v212
      %v321 = vunpack.c.l.b16 %v213
      %v322 = vpack.c.b16 %v319, %v318
      %v323 = vpack.c.b16 %v321, %v320
      %v326 = vsel %vm256, %v226, 0
      %v329 = vsel %vm256, %v313, 0
      %331 = vmatprep.subr.bf16.mxu0 0
      %332 = vmatpush1.bf16.msra.mxu0 %v322
      %333 = vmatprep.subr.bf16.mxu0 0
      %334 = vmatpush1.bf16.msra.mxu0 %v323
      %335 = vmatprep.subr.bf16.mxu0 0
      %336 = vmatpush1.bf16.msra.mxu0 0
      %337 = vmatprep.subr.bf16.mxu0 0
      %338 = vmatpush1.bf16.msra.mxu0 0
      %339 = vmatprep.subr.bf16.mxu0 0
      %340 = vmatpush1.bf16.msra.mxu0 0
      %341 = vmatprep.subr.bf16.mxu0 0
      %342 = vmatpush1.bf16.msra.mxu0 0
      %343 = vmatprep.subr.bf16.mxu0 0
      %344 = vmatpush1.bf16.msra.mxu0 0
      %345 = vmatprep.subr.bf16.mxu0 0
      %346 = vmatpush1.bf16.msra.mxu0 0
      %347 = vmatprep.subr.bf16.mxu0 0
      %348 = vmatpush1.bf16.msra.mxu0 0
      %349 = vmatprep.subr.bf16.mxu0 0
      %350 = vmatpush1.bf16.msra.mxu0 0
      %351 = vmatprep.subr.bf16.mxu0 0
      %352 = vmatpush1.bf16.msra.mxu0 0
      %353 = vmatprep.subr.bf16.mxu0 0
      %354 = vmatpush1.bf16.msra.mxu0 0
      %355 = vmatprep.subr.bf16.mxu0 0
      %356 = vmatpush1.bf16.msra.mxu0 0
      %357 = vmatprep.subr.bf16.mxu0 0
      %358 = vmatpush1.bf16.msra.mxu0 0
      %359 = vmatprep.subr.bf16.mxu0 0
      %360 = vmatpush1.bf16.msra.mxu0 0
      %361 = vmatprep.subr.bf16.mxu0 0
      %362 = vmatpush1.bf16.msra.mxu0 0
      %363 = vmatprep.mubr.bf16.mxu0 0
      %364 = vmatmul.mubr.bf16.gmra.mrb[0].mxu0 %v326
      %v365 = vpop.f32.mrb[0].mxu0
      %v366 = vadd.f32 %v298, %v365
      %v367 = vpop.f32.mrb[0].mxu0
      %v368 = vpop.f32.mrb[0].mxu0
      %v369 = vadd.f32 %v301, %v368
      %v370 = vpop.f32.mrb[0].mxu0
      %371 = vmatprep.mubr.bf16.mxu0 0
      %372 = vmatmul.mubr.bf16.gmra.mrb[0].mxu0 %v329
      %v373 = vpop.f32.mrb[0].mxu0
      %v374 = vadd.f32 %v306, %v373
      %v375 = vpop.f32.mrb[0].mxu0
      %v376 = vpop.f32.mrb[0].mxu0
      %v377 = vpop.f32.mrb[0].mxu0
      %378 = vdwg.mxu0
      %v379 = vld [vmem:[#allocation2] sm:$0xe]
      %s380 = scalar_lea.vmem %s1, 32
      %v381 = vld [vmem:[%s380] sm:$0xf]
      %v382 = vld [vmem:[%s380 + $0x4] sm:$0xf]
      %v383 = vld [vmem:[%s380 + $0x8] sm:$0xf]
      %v384 = vld [vmem:[%s380 + $0xc] sm:$0xf]
      %v386 = vunpack.c.l.b16 %v379
      %v387 = vpack.c.b16 %v224, %v386
      %vm388 = vcmask 1046528
      %v389 = vrot.slane %v387, 1
      %v390 = vrot.slane %v227, 1
      %v391 = vsel %vm388, %v389, %v390
      %v396 = vunpack.c.l.b16 %v381
      %v397 = vunpack.c.l.b16 %v382
      %v398 = vunpack.c.l.b16 %v383
      %v399 = vunpack.c.l.b16 %v384
      %v400 = vpack.c.b16 %v397, %v396
      %v401 = vpack.c.b16 %v399, %v398
      %v405 = vsel %vm256, %v391, 0
      %v408 = vsel %vm256, %v390, 0
      %410 = vmatprep.subr.bf16.mxu0 0
      %411 = vmatpush1.bf16.msra.mxu0 %v400
      %412 = vmatprep.subr.bf16.mxu0 0
      %413 = vmatpush1.bf16.msra.mxu0 %v401
      %414 = vmatprep.subr.bf16.mxu0 0
      %415 = vmatpush1.bf16.msra.mxu0 0
      %416 = vmatprep.subr.bf16.mxu0 0
      %417 = vmatpush1.bf16.msra.mxu0 0
      %418 = vmatprep.subr.bf16.mxu0 0
      %419 = vmatpush1.bf16.msra.mxu0 0
      %420 = vmatprep.subr.bf16.mxu0 0
      %421 = vmatpush1.bf16.msra.mxu0 0
      %422 = vmatprep.subr.bf16.mxu0 0
      %423 = vmatpush1.bf16.msra.mxu0 0
      %424 = vmatprep.subr.bf16.mxu0 0
      %425 = vmatpush1.bf16.msra.mxu0 0
      %426 = vmatprep.subr.bf16.mxu0 0
      %427 = vmatpush1.bf16.msra.mxu0 0
      %428 = vmatprep.subr.bf16.mxu0 0
      %429 = vmatpush1.bf16.msra.mxu0 0
      %430 = vmatprep.subr.bf16.mxu0 0
      %431 = vmatpush1.bf16.msra.mxu0 0
      %432 = vmatprep.subr.bf16.mxu0 0
      %433 = vmatpush1.bf16.msra.mxu0 0
      %434 = vmatprep.subr.bf16.mxu0 0
      %435 = vmatpush1.bf16.msra.mxu0 0
      %436 = vmatprep.subr.bf16.mxu0 0
      %437 = vmatpush1.bf16.msra.mxu0 0
      %438 = vmatprep.subr.bf16.mxu0 0
      %439 = vmatpush1.bf16.msra.mxu0 0
      %440 = vmatprep.subr.bf16.mxu0 0
      %441 = vmatpush1.bf16.msra.mxu0 0
      %442 = vmatprep.mubr.bf16.mxu0 0
      %443 = vmatmul.mubr.bf16.gmra.mrb[0].mxu0 %v405
      %v444 = vpop.f32.mrb[0].mxu0
      %v445 = vadd.f32 0.0, %v444
      %v446 = vpop.f32.mrb[0].mxu0
      %v447 = vpop.f32.mrb[0].mxu0
      %v448 = vadd.f32 0.0, %v447
      %v449 = vpop.f32.mrb[0].mxu0
      %450 = vmatprep.mubr.bf16.mxu0 0
      %451 = vmatmul.mubr.bf16.gmra.mrb[0].mxu0 %v408
      %v452 = vpop.f32.mrb[0].mxu0
      %v453 = vadd.f32 0.0, %v452
      %v454 = vpop.f32.mrb[0].mxu0
      %v455 = vpop.f32.mrb[0].mxu0
      %v456 = vpop.f32.mrb[0].mxu0
      %457 = vdwg.mxu0
      %v458 = vadd.f32 %v366, %v445
      %v459 = vadd.f32 %v369, %v448
      %v460 = vadd.f32 %v374, %v453
      %461 = vst.msk [vmem:[%s177] sm:$0xff] %vm256, %v458
      %462 = vst.msk [vmem:[%s177 + $0x8] sm:$0xff] %vm256, %v459
      %vm463 = vcmask 254976
      %464 = vst.msk [vmem:[%s177 + $0x10] sm:$0x3] %vm463, %v460
      %v465 = vsel %vm256, %v458, 0.0
      %v466 = vsel %vm256, %v459, 0.0
      %v467 = vadd.f32 %v465, %v466
      %v468 = vsel %vm463, %v460, 0.0
      %v469 = vadd.f32 %v467, %v468
      %v470 = vrot.slane %v469, 4
      %v471 = vadd.f32 %v469, %v470
      %v472 = vrot.slane %v471, 2
      %v473 = vadd.f32 %v471, %v472
      %v474 = vrot.slane %v473, 1
      %v475 = vadd.f32 %v473, %v474
      %476 = vst.msk [vmem:[%s181] sm:$0x1] %vm202, %v475
      %v477 = vmul.f32 %v458, %v458
      %v478 = vmul.f32 %v459, %v459
      %v479 = vmul.f32 %v460, %v460
      %v480 = vsel %vm256, %v477, 0.0
      %v481 = vsel %vm256, %v478, 0.0
      %v482 = vadd.f32 %v480, %v481
      %v483 = vsel %vm463, %v479, 0.0
      %v484 = vadd.f32 %v482, %v483
      %v485 = vrot.slane %v484, 4
      %v486 = vadd.f32 %v484, %v485
      %v487 = vrot.slane %v486, 2
      %v488 = vadd.f32 %v486, %v487
      %v489 = vrot.slane %v488, 1
      %v490 = vadd.f32 %v488, %v489
      %491 = vst.msk [vmem:[%s181 + $0x1] sm:$0x1] %vm202, %v490
      %p492 = scmp.lt.s32.totalorder %s15, 1
      %s493 = scalar_select %p492, %s15, 1
      %s494 = smul.addr %s493, 3
      %s495 = smul.addr %s494, 8
      %s496 = scalar_lea.vmem %s2, %s495
      %p497 = scmp.lt.s32.totalorder %s15, 1
      %s498 = scalar_select %p497, %s15, 1
      %s499 = smul.addr %s498, 2
      %s500 = scalar_lea.vmem %s3, %s499
      // Predicated region
      $region29: #{conv_layer_forward.2} parent=27 // pred_check
        %p501 = pneg %p80
      $region30: #{conv_layer_forward.2} parent=27 // pred_check_branch
        %503 = sbr.rel (%p501) target = $region32
      $region31: #{conv_layer_forward.2} parent=27 // pred_region
        _
      $region32: #{conv_layer_forward.2} parent=27 // pred_fallthru
        _
      // Predicated region
      $region33: #{conv_layer_forward.2} parent=27 // pred_check
        %p504 = pneg %p106
      $region34: #{conv_layer_forward.2} parent=27 // pred_check_branch
        %506 = sbr.rel (%p504) target = $region36
      $region35: #{conv_layer_forward.2} parent=27 // pred_region
        _
      $region36: #{conv_layer_forward.2} parent=27 // pred_fallthru
        _
    $region28: #{conv_layer_forward.2} parent=5 // pred_fallthru
      _
    %p507 = scmp.le.s32.totalorder 2, %s10
    // Predicated region
    $region37: #{conv_layer_forward.2} parent=5 // pred_check
      %p508 = pneg %p507
    $region38: #{conv_layer_forward.2} parent=5 // pred_check_branch
      %510 = sbr.rel (%p508) target = $region40
    $region39: #{conv_layer_forward.2} parent=5 // pred_region
      %s511 = ssub.s32 %s10, 2
      // Predicated region
      $region41: #{conv_layer_forward.2} parent=39 // pred_check
        %p512 = pneg %p86
      $region42: #{conv_layer_forward.2} parent=39 // pred_check_branch
        %514 = sbr.rel (%p512) target = $region44
      $region43: #{conv_layer_forward.2} parent=39 // pred_region
        %p515 = scmp.lt.s32.totalorder %s16, 1
        %s516 = scalar_select %p515, %s16, 1
        %s517 = smul.addr %s516, 3
        %s518 = smul.addr %s517, 8
        %s519 = scalar_lea.vmem %s2, %s518
      $region44: #{conv_layer_forward.2} parent=39 // pred_fallthru
        _
      // Predicated region
      $region45: #{conv_layer_forward.2} parent=39 // pred_check
        %p520 = pneg %p112
      $region46: #{conv_layer_forward.2} parent=39 // pred_check_branch
        %522 = sbr.rel (%p520) target = $region48
      $region47: #{conv_layer_forward.2} parent=39 // pred_region
        %p523 = scmp.lt.s32.totalorder %s16, 1
        %s524 = scalar_select %p523, %s16, 1
        %s525 = smul.addr %s524, 2
        %s526 = scalar_lea.vmem %s3, %s525
      $region48: #{conv_layer_forward.2} parent=39 // pred_fallthru
        _
    $region40: #{conv_layer_forward.2} parent=5 // pred_fallthru
      _
  $region6: #{conv_layer_forward.2} parent=0 // loop_footer
    %s14 = sadd.s32 1, %s10
  $region7: #{conv_layer_forward.2} parent=0 // loop_footer_branch
    %9 = sbr.rel target = $region3
  $region8: #{conv_layer_forward.2} parent=0 // loop_exit
    _

</llo_original>
